<compile_context>
chip_gen: v7x
topology: tpu7x:2x2x1
jax: 0.10.0
libtpu: 0.0.40
codegen_flags: <defaults>
</compile_context>

<pallas_src>
import functools

import jax
import jax.numpy as jnp
from jax.experimental import pallas as pl
from jax.experimental.pallas import tpu as pltpu

LANES = 128
SUBLANES = 8
TM_MAX = 16384        # rows per tile cap (8 MiB per f32 pipeline buffer)
CHUNK_ROWS = 512      # per-chunk elementwise working set: ~2 MiB of temporaries

_SUPPORTED_DTYPES = {
    jnp.dtype(jnp.float32), jnp.dtype(jnp.bfloat16), jnp.dtype(jnp.float16),
    jnp.dtype(jnp.int8), jnp.dtype(jnp.uint8),
}


def _norm_dtype(a):
    """Keep narrow dtypes (less HBM traffic); anything exotic -> f32."""
    return a if jnp.dtype(a.dtype) in _SUPPORTED_DTYPES else a.astype(jnp.float32)


def _row_granularity(dt):
    """Sublane packing of the dtype: rows per native (sublane, 128) tile."""
    return {4: 8, 2: 16, 1: 32}[jnp.dtype(dt).itemsize]


def _chunk_sums(x, g, pos_weight):
    """Elementwise math on one (ch, 128) f32 chunk -> four (8, 128) partials."""
    # Numerically stable softplus(-x) = log(1 + exp(-x))
    sp = jnp.maximum(-x, 0.0) + jnp.log1p(jnp.exp(-jnp.abs(x)))
    if pos_weight == 1.0:
        # -[ y*log s(x) + (1-y)*log(1-s(x)) ]  ==  sp + (1-y)*x   when pw == 1
        bce = sp + (1.0 - g) * x
    else:
        bce = pos_weight * g * sp + (1.0 - g) * (x + sp)
    # sigmoid(x) == exp(-softplus(-x)): one EUP exp, no divide.
    p = jnp.exp(-sp)

    def fold(t):
        # (ch,128) -> (ch//8, 8, 128) is a vreg relabeling; sum(0) is VPU-only.
        # (If a v7x bundle dump shows VALU binding, this fold can be moved to
        #  the idle MXU via a ones-vector contraction.)
        return t.reshape(-1, SUBLANES, LANES).sum(axis=0)

    return fold(bce), fold(p * g), fold(p), fold(g)


def _bce_dice_partial_kernel(pr_ref, gt_ref, out_ref, *,
                             bps, n_blocks, rows, chunk, pos_weight):
    c = pl.program_id(0)          # megacore split axis ("parallel")
    i = pl.program_id(1)          # reduction axis ("arbitrary")
    blk = c * bps + i             # logical block index over the row dimension
    tm = pr_ref.shape[0]

    @pl.when(i == 0)
    def _init():
        out_ref[...] = jnp.zeros_like(out_ref)

    def accum(base, ch, masked):
        x = pr_ref[pl.ds(base, ch), :].astype(jnp.float32)
        g = gt_ref[pl.ds(base, ch), :].astype(jnp.float32)
        if masked:
            # Mask rows of the (partial) last block that lie past the array.
            # x = -1e4, g = 0 gives exactly-zero contributions to all four
            # sums (sp == 1e4 exactly, bce == 0, sigmoid == 0), even if the
            # OOB part of the VMEM buffer holds garbage/NaN.
            row = blk * tm + base + jax.lax.broadcasted_iota(
                jnp.int32, (ch, LANES), 0)
            valid = row < rows
            x = jnp.where(valid, x, -1.0e4)
            g = jnp.where(valid, g, 0.0)
        b, tp, ps, gs = _chunk_sums(x, g, pos_weight)
        out_ref[0, 0] += b      # sum of BCE terms
        out_ref[0, 1] += tp     # tp
        out_ref[0, 2] += ps     # sum of probabilities
        out_ref[0, 3] += gs     # sum of targets

    def run_tile(masked):
        # Chunked inner loop bounds live temporaries (~chunk*128*4 * ~8 bytes)
        # so the large pipeline tile never pushes Mosaic into VMEM spills.
        nfc = tm // chunk
        rem = tm - nfc * chunk
        if nfc == 1:
            accum(0, chunk, masked)
        elif nfc > 1:
            @pl.loop(0, nfc)
            def _(j):
                accum(pl.multiple_of(j * chunk, chunk), chunk, masked)
        if rem:
            accum(nfc * chunk, rem, masked)

    if rows % tm == 0:
        # Every block is fully valid: single unmasked path, zero mask overhead.
        run_tile(masked=False)
    else:
        @pl.when(blk < n_blocks - 1)
        def _main():
            run_tile(masked=False)

        @pl.when(blk == n_blocks - 1)
        def _tail():
            run_tile(masked=True)


def _elem_sums_jax(x, g, pos_weight):
    """Plain-JAX sums for the (tiny) unaligned tail — same math as the kernel."""
    x = x.astype(jnp.float32)
    g = g.astype(jnp.float32)
    sp = jnp.maximum(-x, 0.0) + jnp.log1p(jnp.exp(-jnp.abs(x)))
    if pos_weight == 1.0:
        bce = sp + (1.0 - g) * x
    else:
        bce = pos_weight * g * sp + (1.0 - g) * (x + sp)
    p = jnp.exp(-sp)
    return jnp.stack([jnp.sum(bce), jnp.sum(p * g), jnp.sum(p), jnp.sum(g)])


def bce_dice_loss(y_pr, y_gt, *, raito=0.5, beta=0.5, pos_weight=1.0, eps=1e-12,
                  tm_max=TM_MAX, chunk_rows=CHUNK_ROWS):
    """Pallas implementation of BCEDiceLoss.forward for NCHW inputs."""
    assert y_pr.shape == y_gt.shape
    pos_weight = float(pos_weight)

    y_pr = _norm_dtype(y_pr)
    y_gt = _norm_dtype(y_gt)      # bf16 / int8 targets halve/quarter HBM reads
    n_total = int(y_pr.size)

    flat_pr = jnp.reshape(y_pr, (-1,))   # reshape of contiguous array: free
    flat_gt = jnp.reshape(y_gt, (-1,))

    # Row granularity = packed-sublane tiling of the widest-packed input dtype.
    G = max(_row_granularity(flat_pr.dtype), _row_granularity(flat_gt.dtype))
    blk_elems = G * LANES
    n_main = (n_total // blk_elems) * blk_elems   # aligned prefix for the kernel

    sums = jnp.zeros((4,), jnp.float32)

    if n_main:
        rows = n_main // LANES
        pr2 = (flat_pr if n_main == n_total else flat_pr[:n_main]).reshape(rows, LANES)
        gt2 = (flat_gt if n_main == n_total else flat_gt[:n_main]).reshape(rows, LANES)

        # Size the tile from the chip's physical VMEM; leave headroom for the
        # chunked temporaries, the output block and Mosaic internal scratch.
        vmem_cap = 64 << 20
        try:
            vmem_cap = int(getattr(pltpu.get_tpu_info(), "vmem_capacity_bytes",
                                   vmem_cap))
        except Exception:
            pass
        itemsizes = pr2.dtype.itemsize + gt2.dtype.itemsize
        per_row = 2 * LANES * itemsizes            # 2 pipeline buffers per input
        tm = max(G, min(int(tm_max), int(vmem_cap * 0.55) // per_row, rows))
        if tm < rows:
            tm = max(G, (tm // G) * G)             # (8,128)-rule / packed tiling
        n_blocks = -(-rows // tm)

        # Megacore split only when it is free of phantom-block DMA waste and
        # there is enough work to matter; no-op on single-TC v5e/v6e.
        ns = 2 if (n_blocks >= 8 and n_blocks % 2 == 0) else 1
        bps = n_blocks // ns

        chunk = max(G, (min(int(chunk_rows), tm) // G) * G)

        pipeline_bytes = 2 * tm * LANES * itemsizes
        vmem_limit = int(min(vmem_cap * 0.85, pipeline_bytes + (12 << 20)))

        kernel = functools.partial(
            _bce_dice_partial_kernel,
            bps=bps, n_blocks=n_blocks, rows=rows, chunk=chunk,
            pos_weight=pos_weight)

        def in_map(c, i):
            return (c * bps + i, 0)

        partials = pl.pallas_call(
            kernel,
            out_shape=jax.ShapeDtypeStruct((ns, 4, SUBLANES, LANES), jnp.float32),
            grid_spec=pltpu.PrefetchScalarGridSpec(
                num_scalar_prefetch=0,
                grid=(ns, bps),
                in_specs=[pl.BlockSpec((tm, LANES), in_map),
                          pl.BlockSpec((tm, LANES), in_map)],
                out_specs=pl.BlockSpec((1, 4, SUBLANES, LANES),
                                       lambda c, i: (c, 0, 0, 0)),
            ),
            compiler_params=pltpu.CompilerParams(
                dimension_semantics=("parallel", "arbitrary"),
                vmem_limit_bytes=vmem_limit,
            ),
        )(pr2, gt2)

        sums = sums + jnp.sum(partials, axis=(0, 2, 3))   # tiny final reduce

    if n_main != n_total:
        # Unaligned tail (< G*128 elements): fold in plain JAX, one pass, no pad.
        sums = sums + _elem_sums_jax(flat_pr[n_main:], flat_gt[n_main:], pos_weight)

    bce_sum, tp, p_sum, g_sum = sums[0], sums[1], sums[2], sums[3]
    bce_mean = bce_sum / jnp.float32(n_total)
    fp = p_sum - tp
    fn = g_sum - tp
    b2 = beta * beta
    fbeta = ((1.0 + b2) * tp + eps) / ((1.0 + b2) * tp + b2 * fn + fp + eps)
    dice_loss = 1.0 - fbeta

    return raito * bce_mean + (1.0 - raito) * dice_loss


if __name__ == "__main__":
    key = jax.random.PRNGKey(0)
    k_pr, k_gt = jax.random.split(key)

    # Pure-JAX reference of the same math.
    def _ref(x, g, raito=0.5, beta=0.5, pw=1.0, eps=1e-12):
        x = x.astype(jnp.float32)
        g = g.astype(jnp.float32)
        sp = jnp.maximum(-x, 0.0) + jnp.log1p(jnp.exp(-jnp.abs(x)))
        bce = jnp.mean(pw * g * sp + (1.0 - g) * (x + sp))
        p = jax.nn.sigmoid(x)
        tp = jnp.sum(p * g)
        fp = jnp.sum(p) - tp
        fn = jnp.sum(g) - tp
        b2 = beta * beta
        fb = ((1 + b2) * tp + eps) / ((1 + b2) * tp + b2 * fn + fp + eps)
        return raito * bce + (1 - raito) * (1 - fb)

    # 1) Main NCHW f32 case (single full block, no masking).
    shape = (2, 4, 16, 16)
    y_pr = jax.random.normal(k_pr, shape, dtype=jnp.float32)                # logits
    y_gt = (jax.random.uniform(k_gt, shape) > 0.5).astype(jnp.float32)      # 0/1 mask
    loss = jax.block_until_ready(bce_dice_loss(y_pr, y_gt))
    assert jnp.allclose(loss, _ref(y_pr, y_gt), rtol=1e-5, atol=1e-5), (loss,)

    # 2) bf16 targets (exact for a 0/1 mask; halves target-stream HBM bytes).
    loss_bf = jax.block_until_ready(bce_dice_loss(y_pr, y_gt.astype(jnp.bfloat16)))
    assert jnp.allclose(loss_bf, _ref(y_pr, y_gt), rtol=1e-5, atol=1e-5), (loss_bf,)

    # 3) Multi-block grid with a masked partial last block + chunked pl.loop.
    shape3 = (1, 2, 40, 128)
    y_pr3 = jax.random.normal(k_pr, shape3, dtype=jnp.float32)
    y_gt3 = (jax.random.uniform(k_gt, shape3) > 0.5).astype(jnp.float32)
    loss3 = jax.block_until_ready(bce_dice_loss(y_pr3, y_gt3, tm_max=32, chunk_rows=8))
    assert jnp.allclose(loss3, _ref(y_pr3, y_gt3), rtol=1e-5, atol=1e-5), (loss3,)

    # 4) Remainder-chunk path (tm not a multiple of chunk) + masked last block.
    loss4 = jax.block_until_ready(bce_dice_loss(y_pr3, y_gt3, tm_max=48, chunk_rows=32))
    assert jnp.allclose(loss4, _ref(y_pr3, y_gt3), rtol=1e-5, atol=1e-5), (loss4,)

    # 5) Two-way outer ("parallel") split path: n_blocks = 8 -> ns = 2.
    shape5 = (1, 1, 64, 128)
    y_pr5 = jax.random.normal(k_pr, shape5, dtype=jnp.float32)
    y_gt5 = (jax.random.uniform(k_gt, shape5) > 0.5).astype(jnp.float32)
    loss5 = jax.block_until_ready(bce_dice_loss(y_pr5, y_gt5, tm_max=8, chunk_rows=8))
    assert jnp.allclose(loss5, _ref(y_pr5, y_gt5), rtol=1e-5, atol=1e-5), (loss5,)

    # 6) Ragged size: kernel on the aligned prefix + plain-JAX tail (no pad copy).
    shape6 = (1, 1, 33, 40)
    y_pr6 = jax.random.normal(k_pr, shape6, dtype=jnp.float32)
    y_gt6 = (jax.random.uniform(k_gt, shape6) > 0.5).astype(jnp.float32)
    loss6 = jax.block_until_ready(bce_dice_loss(y_pr6, y_gt6))
    assert jnp.allclose(loss6, _ref(y_pr6, y_gt6), rtol=1e-5, atol=1e-5), (loss6,)

    # 7) Tiny fully-unaligned size: pure plain-JAX path.
    shape7 = (1, 3, 17, 13)
    y_pr7 = jax.random.normal(k_pr, shape7, dtype=jnp.float32)
    y_gt7 = (jax.random.uniform(k_gt, shape7) > 0.5).astype(jnp.float32)
    loss7 = jax.block_until_ready(bce_dice_loss(y_pr7, y_gt7))
    assert jnp.allclose(loss7, _ref(y_pr7, y_gt7), rtol=1e-5, atol=1e-5), (loss7,)

    # Non-unit pos_weight branch.
    loss_pw = jax.block_until_ready(bce_dice_loss(y_pr, y_gt, pos_weight=3.0))
    assert jnp.allclose(loss_pw, _ref(y_pr, y_gt, pw=3.0), rtol=1e-5, atol=1e-5), (loss_pw,)

    print("KERNEL_OK")
</pallas_src>

<mosaic_0001>
module attributes {stable_mosaic.version = 11 : i64} {
  func.func @_bce_dice_partial_kernel(%arg0: i32, %arg1: i32, %arg2: memref<16x128xf32, #tpu.memory_space<vmem>>, %arg3: memref<16x128xf32, #tpu.memory_space<vmem>>, %arg4: memref<1x4x8x128xf32, #tpu.memory_space<vmem>>) attributes {dimension_semantics = [#tpu.dimension_semantics<parallel>, #tpu.dimension_semantics<arbitrary>], iteration_bounds = array<i64: 1, 1>, scalar_prefetch = 0 : i64, scratch_operands = 0 : i64, tpu.core_type = #tpu.core_type<tc>, window_params = [{transform_indices = @transform_0, window_bounds = array<i64: 16, 128>}, {transform_indices = @transform_1, window_bounds = array<i64: 16, 128>}, {transform_indices = @transform_2, window_bounds = array<i64: 1, 4, 8, 128>}]} {
    %c0_i32 = arith.constant 0 : i32
    %0 = arith.cmpi eq, %arg1, %c0_i32 : i32
    %1 = arith.extui %0 : i1 to i32
    %c0_i32_0 = arith.constant 0 : i32
    %2 = arith.cmpi ne, %1, %c0_i32_0 : i32
    scf.if %2 {
      %cst_41 = arith.constant 0.000000e+00 : f32
      %55 = vector.broadcast %cst_41 : f32 to vector<1x4x8x128xf32>
      %c0_42 = arith.constant 0 : index
      %c0_43 = arith.constant 0 : index
      %c0_44 = arith.constant 0 : index
      %c0_45 = arith.constant 0 : index
      %56 = vector.load %arg4[%c0_42, %c0_43, %c0_44, %c0_45] : memref<1x4x8x128xf32, #tpu.memory_space<vmem>>, vector<1x4x8x128xf32>
      tpu.vector_store %arg4[%c0_42, %c0_43, %c0_44, %c0_45], %55 {strides = array<i32>} : memref<1x4x8x128xf32, #tpu.memory_space<vmem>>, vector<1x4x8x128xf32>,
    } else {
    }
    %c0 = arith.constant 0 : index
    %c0_1 = arith.constant 0 : index
    %3 = vector.load %arg2[%c0, %c0_1] : memref<16x128xf32, #tpu.memory_space<vmem>>, vector<16x128xf32>
    %c0_2 = arith.constant 0 : index
    %c0_3 = arith.constant 0 : index
    %4 = vector.load %arg3[%c0_2, %c0_3] : memref<16x128xf32, #tpu.memory_space<vmem>>, vector<16x128xf32>
    %cst = arith.constant 0.000000e+00 : f32
    %5 = vector.broadcast %cst : f32 to vector<16x128xf32>
    %6 = arith.subf %5, %3 : vector<16x128xf32>
    %cst_4 = arith.constant 0.000000e+00 : f32
    %7 = vector.broadcast %cst_4 : f32 to vector<16x128xf32>
    %8 = arith.maximumf %6, %7 : vector<16x128xf32>
    %9 = math.absf %3 : vector<16x128xf32>
    %cst_5 = arith.constant 0.000000e+00 : f32
    %10 = vector.broadcast %cst_5 : f32 to vector<16x128xf32>
    %11 = arith.subf %10, %9 : vector<16x128xf32>
    %12 = math.exp %11 : vector<16x128xf32>
    %13 = math.log1p %12 : vector<16x128xf32>
    %14 = arith.addf %8, %13 : vector<16x128xf32>
    %cst_6 = arith.constant 1.000000e+00 : f32
    %15 = vector.broadcast %cst_6 : f32 to vector<16x128xf32>
    %16 = arith.subf %15, %4 : vector<16x128xf32>
    %17 = arith.mulf %16, %3 : vector<16x128xf32>
    %18 = arith.addf %14, %17 : vector<16x128xf32>
    %cst_7 = arith.constant 0.000000e+00 : f32
    %19 = vector.broadcast %cst_7 : f32 to vector<16x128xf32>
    %20 = arith.subf %19, %14 : vector<16x128xf32>
    %21 = math.exp %20 : vector<16x128xf32>
    %22 = vector.shape_cast %18 : vector<16x128xf32> to vector<2x8x128xf32>
    %cst_8 = arith.constant dense<0.000000e+00> : vector<8x128xf32>
    %23 = vector.multi_reduction <add>, %22, %cst_8 [0] : vector<2x8x128xf32> to vector<8x128xf32>
    %24 = arith.mulf %21, %4 : vector<16x128xf32>
    %25 = vector.shape_cast %24 : vector<16x128xf32> to vector<2x8x128xf32>
    %cst_9 = arith.constant dense<0.000000e+00> : vector<8x128xf32>
    %26 = vector.multi_reduction <add>, %25, %cst_9 [0] : vector<2x8x128xf32> to vector<8x128xf32>
    %27 = vector.shape_cast %21 : vector<16x128xf32> to vector<2x8x128xf32>
    %cst_10 = arith.constant dense<0.000000e+00> : vector<8x128xf32>
    %28 = vector.multi_reduction <add>, %27, %cst_10 [0] : vector<2x8x128xf32> to vector<8x128xf32>
    %29 = vector.shape_cast %4 : vector<16x128xf32> to vector<2x8x128xf32>
    %cst_11 = arith.constant dense<0.000000e+00> : vector<8x128xf32>
    %30 = vector.multi_reduction <add>, %29, %cst_11 [0] : vector<2x8x128xf32> to vector<8x128xf32>
    %c0_12 = arith.constant 0 : index
    %c0_13 = arith.constant 0 : index
    %c0_14 = arith.constant 0 : index
    %c0_15 = arith.constant 0 : index
    %31 = vector.load %arg4[%c0_12, %c0_13, %c0_14, %c0_15] : memref<1x4x8x128xf32, #tpu.memory_space<vmem>>, vector<1x1x8x128xf32>
    %32 = vector.shape_cast %31 : vector<1x1x8x128xf32> to vector<8x128xf32>
    %33 = arith.addf %32, %23 : vector<8x128xf32>
    %c0_16 = arith.constant 0 : index
    %c0_17 = arith.constant 0 : index
    %c0_18 = arith.constant 0 : index
    %c0_19 = arith.constant 0 : index
    %34 = vector.load %arg4[%c0_16, %c0_17, %c0_18, %c0_19] : memref<1x4x8x128xf32, #tpu.memory_space<vmem>>, vector<1x1x8x128xf32>
    %35 = vector.shape_cast %34 : vector<1x1x8x128xf32> to vector<8x128xf32>
    %36 = vector.shape_cast %33 : vector<8x128xf32> to vector<1x1x8x128xf32>
    tpu.vector_store %arg4[%c0_16, %c0_17, %c0_18, %c0_19], %36 {strides = array<i32>} : memref<1x4x8x128xf32, #tpu.memory_space<vmem>>, vector<1x1x8x128xf32>,
    %c0_20 = arith.constant 0 : index
    %c1 = arith.constant 1 : index
    %c0_21 = arith.constant 0 : index
    %c0_22 = arith.constant 0 : index
    %37 = vector.load %arg4[%c0_20, %c1, %c0_21, %c0_22] : memref<1x4x8x128xf32, #tpu.memory_space<vmem>>, vector<1x1x8x128xf32>
    %38 = vector.shape_cast %37 : vector<1x1x8x128xf32> to vector<8x128xf32>
    %39 = arith.addf %38, %26 : vector<8x128xf32>
    %c0_23 = arith.constant 0 : index
    %c1_24 = arith.constant 1 : index
    %c0_25 = arith.constant 0 : index
    %c0_26 = arith.constant 0 : index
    %40 = vector.load %arg4[%c0_23, %c1_24, %c0_25, %c0_26] : memref<1x4x8x128xf32, #tpu.memory_space<vmem>>, vector<1x1x8x128xf32>
    %41 = vector.shape_cast %40 : vector<1x1x8x128xf32> to vector<8x128xf32>
    %42 = vector.shape_cast %39 : vector<8x128xf32> to vector<1x1x8x128xf32>
    tpu.vector_store %arg4[%c0_23, %c1_24, %c0_25, %c0_26], %42 {strides = array<i32>} : memref<1x4x8x128xf32, #tpu.memory_space<vmem>>, vector<1x1x8x128xf32>,
    %c0_27 = arith.constant 0 : index
    %c2 = arith.constant 2 : index
    %c0_28 = arith.constant 0 : index
    %c0_29 = arith.constant 0 : index
    %43 = vector.load %arg4[%c0_27, %c2, %c0_28, %c0_29] : memref<1x4x8x128xf32, #tpu.memory_space<vmem>>, vector<1x1x8x128xf32>
    %44 = vector.shape_cast %43 : vector<1x1x8x128xf32> to vector<8x128xf32>
    %45 = arith.addf %44, %28 : vector<8x128xf32>
    %c0_30 = arith.constant 0 : index
    %c2_31 = arith.constant 2 : index
    %c0_32 = arith.constant 0 : index
    %c0_33 = arith.constant 0 : index
    %46 = vector.load %arg4[%c0_30, %c2_31, %c0_32, %c0_33] : memref<1x4x8x128xf32, #tpu.memory_space<vmem>>, vector<1x1x8x128xf32>
    %47 = vector.shape_cast %46 : vector<1x1x8x128xf32> to vector<8x128xf32>
    %48 = vector.shape_cast %45 : vector<8x128xf32> to vector<1x1x8x128xf32>
    tpu.vector_store %arg4[%c0_30, %c2_31, %c0_32, %c0_33], %48 {strides = array<i32>} : memref<1x4x8x128xf32, #tpu.memory_space<vmem>>, vector<1x1x8x128xf32>,
    %c0_34 = arith.constant 0 : index
    %c3 = arith.constant 3 : index
    %c0_35 = arith.constant 0 : index
    %c0_36 = arith.constant 0 : index
    %49 = vector.load %arg4[%c0_34, %c3, %c0_35, %c0_36] : memref<1x4x8x128xf32, #tpu.memory_space<vmem>>, vector<1x1x8x128xf32>
    %50 = vector.shape_cast %49 : vector<1x1x8x128xf32> to vector<8x128xf32>
    %51 = arith.addf %50, %30 : vector<8x128xf32>
    %c0_37 = arith.constant 0 : index
    %c3_38 = arith.constant 3 : index
    %c0_39 = arith.constant 0 : index
    %c0_40 = arith.constant 0 : index
    %52 = vector.load %arg4[%c0_37, %c3_38, %c0_39, %c0_40] : memref<1x4x8x128xf32, #tpu.memory_space<vmem>>, vector<1x1x8x128xf32>
    %53 = vector.shape_cast %52 : vector<1x1x8x128xf32> to vector<8x128xf32>
    %54 = vector.shape_cast %51 : vector<8x128xf32> to vector<1x1x8x128xf32>
    tpu.vector_store %arg4[%c0_37, %c3_38, %c0_39, %c0_40], %54 {strides = array<i32>} : memref<1x4x8x128xf32, #tpu.memory_space<vmem>>, vector<1x1x8x128xf32>,
    return
  }
  func.func @transform_0(%arg0: i32, %arg1: i32) -> (i32, i32) {
    %c1_i32 = arith.constant 1 : i32
    %0 = arith.muli %arg0, %c1_i32 : i32
    %1 = arith.addi %0, %arg1 : i32
    %c0_i32 = arith.constant 0 : i32
    %c0_i32_0 = arith.constant 0 : i32
    return %1, %c0_i32 : i32, i32
  }
  func.func @transform_1(%arg0: i32, %arg1: i32) -> (i32, i32) {
    %c1_i32 = arith.constant 1 : i32
    %0 = arith.muli %arg0, %c1_i32 : i32
    %1 = arith.addi %0, %arg1 : i32
    %c0_i32 = arith.constant 0 : i32
    %c0_i32_0 = arith.constant 0 : i32
    return %1, %c0_i32 : i32, i32
  }
  func.func @transform_2(%arg0: i32, %arg1: i32) -> (i32, i32, i32, i32) {
    %c0_i32 = arith.constant 0 : i32
    %c0_i32_0 = arith.constant 0 : i32
    %c0_i32_1 = arith.constant 0 : i32
    %c0_i32_2 = arith.constant 0 : i32
    return %arg0, %c0_i32, %c0_i32_0, %c0_i32_1 : i32, i32, i32, i32
  }
}

</mosaic_0001>

<llo_original>
// kernel: tpu_custom_call.1
$region0: #{tpu_custom_call.1}
  #allocation0 [shape = 'u32[]', space=smem, size = 0x4, offset = 0x4, fixed_abs, tag = 'smem constant byte address 0x4 - core index']
  #allocation1 [shape = 'u32[144,128]{1,0:T(1,128)}', space=vmem, size = 0x12000, scoped, tag = 'internal scratch']
  %s0 = inlined_call_operand.hbm [shape: f32[16,128], index: 0, kind: input, shape index: {}]
  %s1 = inlined_call_operand.hbm [shape: f32[16,128], index: 1, kind: input, shape index: {}]
  %s2 = inlined_call_operand.hbm [shape: f32[1,4,8,128], index: 2, kind: output, shape index: {}]
  %s3 = sld [smem:[#allocation0]]
  $region30: #{tpu_custom_call.1} parent=0
    _
  %s5 = ssub.s32 1, %s3
  %s6 = scalar_select 0, %s5, %s3
  $region1: #{tpu_custom_call.1} parent=0
    #allocation2 [shape = 'u8[8192]{0}', space=vmem, size = 0x2000, scoped, tag = 'input window, operand 0, single buffered']
    #allocation3 [shape = 's32[1]{0}', space=sflag, size = 0x4, scoped, tag = 'scoped memory for tpu_custom_call.1']
    #allocation4 [shape = 's32[1]{0}', space=sflag, size = 0x4, scoped, tag = 'scoped memory for tpu_custom_call.1']
    #allocation5 [shape = 'u8[8192]{0}', space=vmem, size = 0x2000, scoped, tag = 'input window, operand 1, single buffered']
    #allocation6 [shape = 's32[1]{0}', space=sflag, size = 0x4, scoped, tag = 'scoped memory for tpu_custom_call.1']
    #allocation7 [shape = 'u8[16384]{0}', space=vmem, size = 0x4000, scoped, tag = 'output window, operand 0, single buffered']
    %7 = vsyncpa [#allocation3], 0
    %8 = vsyncpa [#allocation6], 0
    %9 = vsyncpa [#allocation4], 0
    // Predicated region
    $region2: #{tpu_custom_call.1} parent=1 // pred_check
      _
    $region3: #{tpu_custom_call.1} parent=1 // pred_check_branch
      %11 = sbr.rel (0) target = $region5
    $region4: #{tpu_custom_call.1} parent=1 // pred_region
      %s12 = sadd.s32 0, 0
      %s13 = smul.u32 2, %s12
      %s15 = ssub.s32 256, 256
      %16 = vsyncadd [#allocation3], %s15
      %s17 = smul.addr %s13, 128
      %s18 = scalar_lea.hbm %s0, %s17
      %s19 = sshll.u32 [#allocation2], 4
      %s20 = int_to_ptr.vmem [resolvable:$true] %s19
      %25 = dma.hbm_to_vmem [thread:$0]  %s18, 256, %s20, [#allocation3], 128, 128, 8
    $region5: #{tpu_custom_call.1} parent=1 // pred_fallthru
      _
    // Predicated region
    $region6: #{tpu_custom_call.1} parent=1 // pred_check
      _
    $region7: #{tpu_custom_call.1} parent=1 // pred_check_branch
      %27 = sbr.rel (0) target = $region9
    $region8: #{tpu_custom_call.1} parent=1 // pred_region
      %s28 = sadd.s32 0, 0
      %s29 = smul.u32 2, %s28
      %s31 = ssub.s32 256, 256
      %32 = vsyncadd [#allocation6], %s31
      %s33 = smul.addr %s29, 128
      %s34 = scalar_lea.hbm %s1, %s33
      %s35 = sshll.u32 [#allocation5], 4
      %s36 = int_to_ptr.vmem [resolvable:$true] %s35
      %41 = dma.hbm_to_vmem [thread:$0]  %s34, 256, %s36, [#allocation6], 128, 128, 8
    $region9: #{tpu_custom_call.1} parent=1 // pred_fallthru
      _
    // Predicated region
    $region10: #{tpu_custom_call.1} parent=1 // pred_check
      _
    $region11: #{tpu_custom_call.1} parent=1 // pred_check_branch
      %43 = sbr.rel (0) target = $region13
    $region12: #{tpu_custom_call.1} parent=1 // pred_region
      %44 = dma.done [#allocation3], 256
    $region13: #{tpu_custom_call.1} parent=1 // pred_fallthru
      _
    // Predicated region
    $region14: #{tpu_custom_call.1} parent=1 // pred_check
      _
    $region15: #{tpu_custom_call.1} parent=1 // pred_check_branch
      %46 = sbr.rel (0) target = $region17
    $region16: #{tpu_custom_call.1} parent=1 // pred_region
      %47 = dma.done [#allocation6], 256
    $region17: #{tpu_custom_call.1} parent=1 // pred_fallthru
      _
    %s48 = sadd.s32 0, 0
    %s49 = smul.u32 2, %s48
    %s50 = sadd.s32 0, 0
    %s51 = smul.u32 2, %s50
    %p52 = scmp.eq.s32.totalorder 0, 0
    // Predicated region
    $region18: #{tpu_custom_call.1} parent=1 // pred_check
      %p53 = pneg %p52
    $region19: #{tpu_custom_call.1} parent=1 // pred_check_branch
      %55 = sbr.rel (%p53) target = $region21
    $region20: #{tpu_custom_call.1} parent=1 // pred_region
      %56 = vst [vmem:[#allocation7] sm:$0xff] 0.0
      %57 = vst [vmem:[#allocation7 + $0x8] sm:$0xff] 0.0
      %58 = vst [vmem:[#allocation7 + $0x10] sm:$0xff] 0.0
      %59 = vst [vmem:[#allocation7 + $0x18] sm:$0xff] 0.0
    $region21: #{tpu_custom_call.1} parent=1 // pred_fallthru
      _
    %v60 = vld [vmem:[#allocation2] sm:$0xff]
    %v61 = vld [vmem:[#allocation2 + $0x8] sm:$0xff]
    %v62 = vld [vmem:[#allocation5] sm:$0xff]
    %v63 = vld [vmem:[#allocation5 + $0x8] sm:$0xff]
    %v64 = vsub.f32 0.0, %v60
    %v65 = vsub.f32 0.0, %v61
    %v66 = vmax.f32 %v64, 0.0
    %v67 = vmax.f32 %v65, 0.0
    %v68 = vand.u32 2147483647, %v60
    %v69 = vand.u32 2147483647, %v61
    %v70 = vsub.f32 0.0, %v68
    %v71 = vsub.f32 0.0, %v69
    %v72 = vmul.f32 %v70, 1.442695
    %v73 = vpow.pop %v72
    %v74 = vmul.f32 %v71, 1.442695
    %v75 = vpow.pop %v74
    %v76 = vadd.f32 %v73, 1.0
    %v77 = vlog2.pop %v76
    %v78 = vmul.f32 %v77, 0.6931472
    %v79 = vmul.f32 -0.5, %v73
    %v80 = vadd.f32 %v79, 1.0
    %v81 = vmul.f32 %v80, %v73
    %v82 = vand.u32 2147483647, %v73
    %vm83 = vcmp.lt.f32.partialorder %v82, 0.0004427343
    %v84 = vsel %vm83, %v81, %v78
    %v85 = vadd.f32 %v75, 1.0
    %v86 = vlog2.pop %v85
    %v87 = vmul.f32 %v86, 0.6931472
    %v88 = vmul.f32 -0.5, %v75
    %v89 = vadd.f32 %v88, 1.0
    %v90 = vmul.f32 %v89, %v75
    %v91 = vand.u32 2147483647, %v75
    %vm92 = vcmp.lt.f32.partialorder %v91, 0.0004427343
    %v93 = vsel %vm92, %v90, %v87
    %v94 = vadd.f32 %v66, %v84
    %v95 = vadd.f32 %v67, %v93
    %v96 = vsub.f32 1.0, %v62
    %v97 = vsub.f32 1.0, %v63
    %v98 = vmul.f32 %v96, %v60
    %v99 = vmul.f32 %v97, %v61
    %v100 = vadd.f32 %v94, %v98
    %v101 = vadd.f32 %v95, %v99
    %v102 = vsub.f32 0.0, %v94
    %v103 = vsub.f32 0.0, %v95
    %v104 = vmul.f32 %v102, 1.442695
    %v105 = vpow.pop %v104
    %v106 = vmul.f32 %v103, 1.442695
    %v107 = vpow.pop %v106
    %v108 = vadd.f32 %v100, %v101
    %v109 = vmul.f32 %v105, %v62
    %v110 = vmul.f32 %v107, %v63
    %v111 = vadd.f32 %v109, %v110
    %v112 = vadd.f32 %v105, %v107
    %v113 = vadd.f32 %v62, %v63
    %v114 = vld [vmem:[#allocation7] sm:$0xff]
    %v115 = vadd.f32 %v114, %v108
    %116 = vst [vmem:[#allocation7] sm:$0xff] %v115
    %s117 = scalar_lea.vmem [#allocation7], 8
    %v118 = vld [vmem:[%s117] sm:$0xff]
    %v119 = vadd.f32 %v118, %v111
    %120 = vst [vmem:[%s117] sm:$0xff] %v119
    %s121 = scalar_lea.vmem [#allocation7], 16
    %v122 = vld [vmem:[%s121] sm:$0xff]
    %v123 = vadd.f32 %v122, %v112
    %124 = vst [vmem:[%s121] sm:$0xff] %v123
    %s125 = scalar_lea.vmem [#allocation7], 24
    %v126 = vld [vmem:[%s125] sm:$0xff]
    %v127 = vadd.f32 %v126, %v113
    %128 = vst [vmem:[%s125] sm:$0xff] %v127
    // Predicated region
    $region22: #{tpu_custom_call.1} parent=1 // pred_check
      _
    $region23: #{tpu_custom_call.1} parent=1 // pred_check_branch
      %130 = sbr.rel (0) target = $region25
    $region24: #{tpu_custom_call.1} parent=1 // pred_region
      %s132 = ssub.s32 512, 512
      %133 = vsyncadd [#allocation4], %s132
      %s134 = sshll.u32 [#allocation7], 4
      %s135 = int_to_ptr.vmem [resolvable:$true] %s134
      %140 = dma.vmem_to_hbm [thread:$0]  %s135, 512, %s2, [#allocation4], 128, 128, 8
    $region25: #{tpu_custom_call.1} parent=1 // pred_fallthru
      _
    // Predicated region
    $region26: #{tpu_custom_call.1} parent=1 // pred_check
      _
    $region27: #{tpu_custom_call.1} parent=1 // pred_check_branch
      %142 = sbr.rel (0) target = $region29
    $region28: #{tpu_custom_call.1} parent=1 // pred_region
      %143 = dma.done [#allocation4], 512
    $region29: #{tpu_custom_call.1} parent=1 // pred_fallthru
      _
    %144 = vsyncpa [#allocation3], 1
    %145 = vsyncpa [#allocation6], 1
    %146 = vsyncpa [#allocation4], 1

</llo_original>
